<compile_context>
chip_gen: v5e
topology: v5e:2x2
jax: 0.10.0
libtpu: 0.0.40
codegen_flags: <defaults>
</compile_context>

<pallas_src>
import math

import jax
import jax.numpy as jnp
from jax import lax
from jax.experimental import pallas as pl
from jax.experimental.pallas import tpu as pltpu

EPS = 1e-12

# Conservative VMEM working-set budget (fits v7x 64 MiB/TC with headroom).
_VMEM_BUDGET = 36 * 1024 * 1024
_VMEM_LIMIT_CAP = 48 * 1024 * 1024
_MAX_BLOCK_ROWS = 1024


def _round_up(x, m):
    return ((x + m - 1) // m) * m


def _layer_norm_rows(y, g, b):
    """TF-style LayerNorm of f32 `y` over the last axis (biased variance)."""
    u = jnp.mean(y, axis=-1, keepdims=True)
    d = y - u
    var = jnp.mean(d * d, axis=-1, keepdims=True)
    inv = lax.rsqrt(var + EPS)
    return g * (d * inv) + b


# ---------------------------------------------------------------------------
# Generic kernel: residual add + LayerNorm (arbitrary sublayer output)
# ---------------------------------------------------------------------------
def _resid_ln_kernel(x_ref, s_ref, g_ref, b_ref, o_ref):
    y = x_ref[...].astype(jnp.float32) + s_ref[...].astype(jnp.float32)
    out = _layer_norm_rows(
        y, g_ref[...].astype(jnp.float32), b_ref[...].astype(jnp.float32)
    )
    o_ref[...] = out.astype(o_ref.dtype)


def _pick_rows_generic(rows, H, in_bytes, out_bytes):
    # Double-buffered: 2 row-tiled inputs + 1 output, plus tiny (1, H) params.
    per_row = 2 * (2 * in_bytes + out_bytes) * H
    fixed = 2 * 2 * H * 4
    br = (_VMEM_BUDGET - fixed) // max(per_row, 1)
    br = min(int(br), _MAX_BLOCK_ROWS, _round_up(rows, 8))
    br = max(8, (br // 8) * 8)
    return br, fixed + per_row * br


@jax.jit
def residual_layernorm(x, sub_out, weight, bias):
    """LayerNorm(x + sub_out).  x, sub_out: (..., H); weight, bias: (H,)."""
    orig_shape = x.shape
    H = orig_shape[-1]
    rows = math.prod(orig_shape[:-1])

    x2 = x.reshape(rows, H)
    s2 = sub_out.reshape(rows, H)

    block_rows, est = _pick_rows_generic(rows, H, x.dtype.itemsize, x.dtype.itemsize)
    rows_p = _round_up(rows, block_rows)
    if rows_p != rows:
        pad = rows_p - rows
        x2 = jnp.pad(x2, ((0, pad), (0, 0)))
        s2 = jnp.pad(s2, ((0, pad), (0, 0)))

    grid = (rows_p // block_rows,)
    vmem_limit = int(min(max(2 * est, 16 << 20), _VMEM_LIMIT_CAP))

    out = pl.pallas_call(
        _resid_ln_kernel,
        out_shape=jax.ShapeDtypeStruct((rows_p, H), x.dtype),
        grid_spec=pltpu.PrefetchScalarGridSpec(
            num_scalar_prefetch=0,
            grid=grid,
            in_specs=[
                pl.BlockSpec((block_rows, H), lambda i: (i, 0)),
                pl.BlockSpec((block_rows, H), lambda i: (i, 0)),
                pl.BlockSpec((1, H), lambda i: (0, 0)),
                pl.BlockSpec((1, H), lambda i: (0, 0)),
            ],
            out_specs=pl.BlockSpec((block_rows, H), lambda i: (i, 0)),
        ),
        compiler_params=pltpu.CompilerParams(
            dimension_semantics=("parallel",),
            vmem_limit_bytes=vmem_limit,
        ),
    )(x2, s2, weight.reshape(1, H), bias.reshape(1, H))

    return out[:rows].reshape(orig_shape)


# ---------------------------------------------------------------------------
# Fused kernel: Linear sublayer (MXU) + residual + LayerNorm in one pass
# ---------------------------------------------------------------------------
def _fused_linear_resid_ln_kernel(xk_ref, w_ref, xr_ref, lb_ref, g_ref, b_ref,
                                  o_ref, acc_ref):
    k = pl.program_id(1)

    @pl.when(k == 0)
    def _():
        acc_ref[...] = jnp.zeros_like(acc_ref)

    # MXU: accumulate x[:, k-tile] @ W[k-tile, :] in f32.
    acc_ref[...] += jnp.dot(
        xk_ref[...], w_ref[...], preferred_element_type=jnp.float32
    )

    @pl.when(k == pl.num_programs(1) - 1)
    def _():
        y = (acc_ref[...]
             + xr_ref[...].astype(jnp.float32)       # residual
             + lb_ref[...].astype(jnp.float32))      # Linear bias
        out = _layer_norm_rows(
            y, g_ref[...].astype(jnp.float32), b_ref[...].astype(jnp.float32)
        )
        o_ref[...] = out.astype(o_ref.dtype)


def _pick_tk(H):
    if H <= 512:
        return H
    for tk in (512, 256, 128):
        if H % tk == 0:
            return tk
    return H  # fallback: single K step


def _pick_rows_fused(rows, H, tk, in_bytes, out_bytes):
    # Fixed per step: W tile (double-buffered) + (1, H) params.
    fixed = 2 * tk * H * in_bytes + 2 * 3 * H * 4
    # Per row: lhs tile + residual tile + output (each double-buffered) + f32 acc.
    per_row = 2 * (tk + H) * in_bytes + 2 * H * out_bytes + 4 * H
    br = (_VMEM_BUDGET - fixed) // max(per_row, 1)
    br = min(int(br), _MAX_BLOCK_ROWS, _round_up(rows, 8))
    br = max(8, (br // 8) * 8)
    return br, fixed + per_row * br


@jax.jit
def sublayer_connection_in_fused(x, lin_w, lin_b, ln_weight, ln_bias):
    """LayerNorm(x + (x @ lin_w + lin_b)).  x: (..., H); lin_w: (H, H)."""
    orig_shape = x.shape
    H = orig_shape[-1]
    rows = math.prod(orig_shape[:-1])
    x2 = x.reshape(rows, H)

    tk = _pick_tk(H)
    nk = H // tk if H % tk == 0 else 1
    if nk == 1:
        tk = H

    block_rows, est = _pick_rows_fused(rows, H, tk, x.dtype.itemsize,
                                       x.dtype.itemsize)
    rows_p = _round_up(rows, block_rows)
    if rows_p != rows:
        x2 = jnp.pad(x2, ((0, rows_p - rows), (0, 0)))

    grid = (rows_p // block_rows, nk)
    vmem_limit = int(min(max(2 * est, 16 << 20), _VMEM_LIMIT_CAP))

    out = pl.pallas_call(
        _fused_linear_resid_ln_kernel,
        out_shape=jax.ShapeDtypeStruct((rows_p, H), x.dtype),
        grid_spec=pltpu.PrefetchScalarGridSpec(
            num_scalar_prefetch=0,
            grid=grid,
            in_specs=[
                pl.BlockSpec((block_rows, tk), lambda i, k: (i, k)),  # matmul lhs
                pl.BlockSpec((tk, H), lambda i, k: (k, 0)),           # Linear W
                pl.BlockSpec((block_rows, H), lambda i, k: (i, 0)),   # residual x (resident across k)
                pl.BlockSpec((1, H), lambda i, k: (0, 0)),            # Linear bias
                pl.BlockSpec((1, H), lambda i, k: (0, 0)),            # LN weight
                pl.BlockSpec((1, H), lambda i, k: (0, 0)),            # LN bias
            ],
            out_specs=pl.BlockSpec((block_rows, H), lambda i, k: (i, 0)),
            scratch_shapes=[pltpu.VMEM((block_rows, H), jnp.float32)],
        ),
        compiler_params=pltpu.CompilerParams(
            dimension_semantics=("parallel", "arbitrary"),
            vmem_limit_bytes=vmem_limit,
        ),
    )(x2, lin_w, x2, lin_b.reshape(1, H),
      ln_weight.reshape(1, H), ln_bias.reshape(1, H))

    return out[:rows].reshape(orig_shape)


# ---------------------------------------------------------------------------
# Reference & demo
# ---------------------------------------------------------------------------
def reference(x, sub_out, weight, bias):
    y = x + sub_out
    u = jnp.mean(y, axis=-1, keepdims=True)
    s = jnp.mean((y - u) ** 2, axis=-1, keepdims=True)
    return weight * ((y - u) / jnp.sqrt(s + EPS)) + bias


if __name__ == "__main__":
    key = jax.random.PRNGKey(0)
    # Small, lane-dense shapes: hidden is a multiple of the 128-lane vreg.
    B, S, H = 2, 8, 128
    kx, kw, kb, kg, kbeta = jax.random.split(key, 5)

    x = jax.random.normal(kx, (B, S, H), dtype=jnp.float32)

    # Deterministic "sublayer": Linear(H, H).
    lin_w = jax.random.normal(kw, (H, H), dtype=jnp.float32) * 0.05
    lin_b = jax.random.normal(kb, (H,), dtype=jnp.float32) * 0.01

    # LayerNorm params (module init is ones/zeros; randomized here to exercise
    # the affine path).
    ln_w = jnp.ones((H,), jnp.float32) + 0.1 * jax.random.normal(kg, (H,), jnp.float32)
    ln_b = 0.1 * jax.random.normal(kbeta, (H,), jnp.float32)

    # Plain-JAX reference (dropout = identity in eval mode).
    sub_out = (
        jnp.einsum("bsh,hk->bsk", x, lin_w, precision=lax.Precision.HIGHEST) + lin_b
    )
    ref = reference(x, sub_out, ln_w, ln_b)

    # 1) Fused path: Linear + residual + LayerNorm in one pallas_call.
    out_fused = jax.block_until_ready(
        sublayer_connection_in_fused(x, lin_w, lin_b, ln_w, ln_b)
    )
    assert out_fused.shape == (B, S, H)
    assert jnp.allclose(out_fused, ref, atol=2e-3, rtol=2e-3), "fused kernel mismatch"

    # 2) Generic path: residual + LayerNorm for an arbitrary sublayer output.
    out_gen = jax.block_until_ready(residual_layernorm(x, sub_out, ln_w, ln_b))
    assert out_gen.shape == (B, S, H)
    assert jnp.allclose(out_gen, ref, atol=1e-5, rtol=1e-5), "generic kernel mismatch"

    print("KERNEL_OK")
</pallas_src>

<mosaic_0001>
module attributes {stable_mosaic.version = 11 : i64} {
  func.func @_fused_linear_resid_ln_kernel(%arg0: i32, %arg1: i32, %arg2: memref<16x128xf32, #tpu.memory_space<vmem>>, %arg3: memref<128x128xf32, #tpu.memory_space<vmem>>, %arg4: memref<16x128xf32, #tpu.memory_space<vmem>>, %arg5: memref<1x128xf32, #tpu.memory_space<vmem>>, %arg6: memref<1x128xf32, #tpu.memory_space<vmem>>, %arg7: memref<1x128xf32, #tpu.memory_space<vmem>>, %arg8: memref<16x128xf32, #tpu.memory_space<vmem>>, %arg9: memref<16x128xf32, #tpu.memory_space<vmem>>) attributes {dimension_semantics = [#tpu.dimension_semantics<parallel>, #tpu.dimension_semantics<arbitrary>], iteration_bounds = array<i64: 1, 1>, scalar_prefetch = 0 : i64, scratch_operands = 1 : i64, tpu.core_type = #tpu.core_type<tc>, window_params = [{transform_indices = @transform_0, window_bounds = array<i64: 16, 128>}, {transform_indices = @transform_1, window_bounds = array<i64: 128, 128>}, {transform_indices = @transform_2, window_bounds = array<i64: 16, 128>}, {pipeline_mode = #tpu.pipeline_mode<synchronous>, transform_indices = @transform_3, window_bounds = array<i64: 1, 128>}, {pipeline_mode = #tpu.pipeline_mode<synchronous>, transform_indices = @transform_4, window_bounds = array<i64: 1, 128>}, {pipeline_mode = #tpu.pipeline_mode<synchronous>, transform_indices = @transform_5, window_bounds = array<i64: 1, 128>}, {transform_indices = @transform_6, window_bounds = array<i64: 16, 128>}]} {
    %c0_i32 = arith.constant 0 : i32
    %0 = arith.cmpi eq, %arg1, %c0_i32 : i32
    %1 = arith.extui %0 : i1 to i32
    %c0_i32_0 = arith.constant 0 : i32
    %2 = arith.cmpi ne, %1, %c0_i32_0 : i32
    scf.if %2 {
      %cst_10 = arith.constant 0.000000e+00 : f32
      %12 = vector.broadcast %cst_10 : f32 to vector<16x128xf32>
      %c0_11 = arith.constant 0 : index
      %c0_12 = arith.constant 0 : index
      %13 = vector.load %arg9[%c0_11, %c0_12] : memref<16x128xf32, #tpu.memory_space<vmem>>, vector<16x128xf32>
      tpu.vector_store %arg9[%c0_11, %c0_12], %12 {strides = array<i32>} : memref<16x128xf32, #tpu.memory_space<vmem>>, vector<16x128xf32>,
    } else {
    }
    %c0 = arith.constant 0 : index
    %c0_1 = arith.constant 0 : index
    %3 = vector.load %arg9[%c0, %c0_1] : memref<16x128xf32, #tpu.memory_space<vmem>>, vector<16x128xf32>
    %c0_2 = arith.constant 0 : index
    %c0_3 = arith.constant 0 : index
    %4 = vector.load %arg2[%c0_2, %c0_3] : memref<16x128xf32, #tpu.memory_space<vmem>>, vector<16x128xf32>
    %c0_4 = arith.constant 0 : index
    %c0_5 = arith.constant 0 : index
    %5 = vector.load %arg3[%c0_4, %c0_5] : memref<128x128xf32, #tpu.memory_space<vmem>>, vector<128x128xf32>
    %cst = arith.constant dense<0.000000e+00> : vector<16x128xf32>
    %6 = tpu.matmul %4, %5, %cst {dimension_numbers = #tpu.dot_dimension_numbers<[1], [0], [0], [1], [0, 0, 1, 1], [], []>} : vector<16x128xf32>, vector<128x128xf32>, vector<16x128xf32> -> vector<16x128xf32>
    %7 = arith.addf %3, %6 : vector<16x128xf32>
    %c0_6 = arith.constant 0 : index
    %c0_7 = arith.constant 0 : index
    %8 = vector.load %arg9[%c0_6, %c0_7] : memref<16x128xf32, #tpu.memory_space<vmem>>, vector<16x128xf32>
    tpu.vector_store %arg9[%c0_6, %c0_7], %7 {strides = array<i32>} : memref<16x128xf32, #tpu.memory_space<vmem>>, vector<16x128xf32>,
    %c0_i32_8 = arith.constant 0 : i32
    %9 = arith.cmpi eq, %arg1, %c0_i32_8 : i32
    %10 = arith.extui %9 : i1 to i32
    %c0_i32_9 = arith.constant 0 : i32
    %11 = arith.cmpi ne, %10, %c0_i32_9 : i32
    scf.if %11 {
      %c0_10 = arith.constant 0 : index
      %c0_11 = arith.constant 0 : index
      %12 = vector.load %arg9[%c0_10, %c0_11] : memref<16x128xf32, #tpu.memory_space<vmem>>, vector<16x128xf32>
      %c0_12 = arith.constant 0 : index
      %c0_13 = arith.constant 0 : index
      %13 = vector.load %arg4[%c0_12, %c0_13] : memref<16x128xf32, #tpu.memory_space<vmem>>, vector<16x128xf32>
      %14 = arith.addf %12, %13 : vector<16x128xf32>
      %c0_14 = arith.constant 0 : index
      %c0_15 = arith.constant 0 : index
      %15 = vector.load %arg5[%c0_14, %c0_15] : memref<1x128xf32, #tpu.memory_space<vmem>>, vector<1x128xf32>
      %16 = vector.broadcast %15 : vector<1x128xf32> to vector<16x128xf32>
      %17 = arith.addf %14, %16 : vector<16x128xf32>
      %c0_16 = arith.constant 0 : index
      %c0_17 = arith.constant 0 : index
      %18 = vector.load %arg6[%c0_16, %c0_17] : memref<1x128xf32, #tpu.memory_space<vmem>>, vector<1x128xf32>
      %c0_18 = arith.constant 0 : index
      %c0_19 = arith.constant 0 : index
      %19 = vector.load %arg7[%c0_18, %c0_19] : memref<1x128xf32, #tpu.memory_space<vmem>>, vector<1x128xf32>
      %cst_20 = arith.constant dense<0.000000e+00> : vector<16xf32>
      %20 = vector.multi_reduction <add>, %17, %cst_20 [1] : vector<16x128xf32> to vector<16xf32>
      %21 = vector.shape_cast %20 : vector<16xf32> to vector<16x1xf32>
      %cst_21 = arith.constant 1.280000e+02 : f32
      %22 = vector.broadcast %cst_21 : f32 to vector<16x1xf32>
      %23 = arith.divf %21, %22 : vector<16x1xf32>
      %24 = vector.broadcast %23 : vector<16x1xf32> to vector<16x128xf32>
      %25 = arith.subf %17, %24 : vector<16x128xf32>
      %26 = arith.mulf %25, %25 : vector<16x128xf32>
      %cst_22 = arith.constant dense<0.000000e+00> : vector<16xf32>
      %27 = vector.multi_reduction <add>, %26, %cst_22 [1] : vector<16x128xf32> to vector<16xf32>
      %28 = vector.shape_cast %27 : vector<16xf32> to vector<16x1xf32>
      %cst_23 = arith.constant 1.280000e+02 : f32
      %29 = vector.broadcast %cst_23 : f32 to vector<16x1xf32>
      %30 = arith.divf %28, %29 : vector<16x1xf32>
      %cst_24 = arith.constant 9.99999996E-13 : f32
      %31 = vector.broadcast %cst_24 : f32 to vector<16x1xf32>
      %32 = arith.addf %30, %31 : vector<16x1xf32>
      %33 = math.rsqrt %32 : vector<16x1xf32>
      %34 = vector.broadcast %33 : vector<16x1xf32> to vector<16x128xf32>
      %35 = arith.mulf %25, %34 : vector<16x128xf32>
      %36 = vector.broadcast %18 : vector<1x128xf32> to vector<16x128xf32>
      %37 = arith.mulf %36, %35 : vector<16x128xf32>
      %38 = vector.broadcast %19 : vector<1x128xf32> to vector<16x128xf32>
      %39 = arith.addf %37, %38 : vector<16x128xf32>
      %c0_25 = arith.constant 0 : index
      %c0_26 = arith.constant 0 : index
      %40 = vector.load %arg8[%c0_25, %c0_26] : memref<16x128xf32, #tpu.memory_space<vmem>>, vector<16x128xf32>
      tpu.vector_store %arg8[%c0_25, %c0_26], %39 {strides = array<i32>} : memref<16x128xf32, #tpu.memory_space<vmem>>, vector<16x128xf32>,
    } else {
    }
    return
  }
  func.func @transform_0(%arg0: i32, %arg1: i32) -> (i32, i32) {
    %c0_i32 = arith.constant 0 : i32
    return %arg0, %arg1 : i32, i32
  }
  func.func @transform_1(%arg0: i32, %arg1: i32) -> (i32, i32) {
    %c0_i32 = arith.constant 0 : i32
    %c0_i32_0 = arith.constant 0 : i32
    return %arg1, %c0_i32 : i32, i32
  }
  func.func @transform_2(%arg0: i32, %arg1: i32) -> (i32, i32) {
    %c0_i32 = arith.constant 0 : i32
    %c0_i32_0 = arith.constant 0 : i32
    return %arg0, %c0_i32 : i32, i32
  }
  func.func @transform_3(%arg0: i32, %arg1: i32) -> (i32, i32) {
    %c0_i32 = arith.constant 0 : i32
    %c0_i32_0 = arith.constant 0 : i32
    %c0_i32_1 = arith.constant 0 : i32
    return %c0_i32, %c0_i32_0 : i32, i32
  }
  func.func @transform_4(%arg0: i32, %arg1: i32) -> (i32, i32) {
    %c0_i32 = arith.constant 0 : i32
    %c0_i32_0 = arith.constant 0 : i32
    %c0_i32_1 = arith.constant 0 : i32
    return %c0_i32, %c0_i32_0 : i32, i32
  }
  func.func @transform_5(%arg0: i32, %arg1: i32) -> (i32, i32) {
    %c0_i32 = arith.constant 0 : i32
    %c0_i32_0 = arith.constant 0 : i32
    %c0_i32_1 = arith.constant 0 : i32
    return %c0_i32, %c0_i32_0 : i32, i32
  }
  func.func @transform_6(%arg0: i32, %arg1: i32) -> (i32, i32) {
    %c0_i32 = arith.constant 0 : i32
    %c0_i32_0 = arith.constant 0 : i32
    return %arg0, %c0_i32 : i32, i32
  }
}

</mosaic_0001>

<llo_original>
// kernel: sublayer_connection_in_fused.1
$region0: #{sublayer_connection_in_fused.1}
  #allocation0 [shape = 'u32[]', space=smem, size = 0x4, offset = 0x4, fixed_abs, tag = 'smem constant byte address 0x4 - core index']
  #allocation1 [shape = 'u32[72,128]{1,0:T(1,128)}', space=vmem, size = 0x9000, scoped, tag = 'internal scratch']
  #allocation2 [shape = 'f32[16,128]{1,0:T(8,128)}', space=vmem, size = 0x2000, scoped, tag = 'scratch operand']
  %s0 = inlined_call_operand.hbm [shape: f32[16,128], index: 0, kind: input, shape index: {}, may-alias: {0,2}]
  %s1 = inlined_call_operand.hbm [shape: f32[128,128], index: 1, kind: input, shape index: {}]
  %s2 = inlined_call_operand.hbm [shape: f32[16,128], index: 2, kind: input, shape index: {}, may-alias: {0,2}]
  %s3 = inlined_call_operand.vmem [shape: f32[1,128], index: 3, kind: input, shape index: {}]
  %s4 = inlined_call_operand.vmem [shape: f32[1,128], index: 4, kind: input, shape index: {}]
  %s5 = inlined_call_operand.vmem [shape: f32[1,128], index: 5, kind: input, shape index: {}]
  %s6 = inlined_call_operand.hbm [shape: f32[16,128], index: 6, kind: output, shape index: {}]
  %s7 = sld [smem:[#allocation0]]
  $region54: #{sublayer_connection_in_fused.1} parent=0
    _
  %s9 = ssub.s32 1, %s7
  %s10 = scalar_select 0, %s9, %s7
  $region1: #{sublayer_connection_in_fused.1} parent=0
    #allocation3 [shape = 'u8[8192]{0}', space=vmem, size = 0x2000, scoped, tag = 'input window, operand 0, single buffered']
    #allocation4 [shape = 's32[1]{0}', space=sflag, size = 0x4, scoped, tag = 'scoped memory for sublayer_connection_in_fused.1']
    #allocation5 [shape = 's32[1]{0}', space=sflag, size = 0x4, scoped, tag = 'scoped memory for sublayer_connection_in_fused.1']
    #allocation6 [shape = 'u8[65536]{0}', space=vmem, size = 0x10000, scoped, tag = 'input window, operand 1, single buffered']
    #allocation7 [shape = 's32[1]{0}', space=sflag, size = 0x4, scoped, tag = 'scoped memory for sublayer_connection_in_fused.1']
    #allocation8 [shape = 'u8[8192]{0}', space=vmem, size = 0x2000, scoped, tag = 'input window, operand 2, single buffered']
    #allocation9 [shape = 'u8[8192]{0}', space=vmem, size = 0x2000, scoped, tag = 'output window, operand 0, single buffered']
    %11 = vsyncpa [#allocation4], 0
    %12 = vsyncpa [#allocation7], 0
    %13 = vsyncpa [#allocation5], 0
    // Predicated region
    $region2: #{sublayer_connection_in_fused.1} parent=1 // pred_check
      _
    $region3: #{sublayer_connection_in_fused.1} parent=1 // pred_check_branch
      %15 = sbr.rel (0) target = $region5
    $region4: #{sublayer_connection_in_fused.1} parent=1 // pred_region
      %17 = vsyncadd [#allocation4], 0
      %s18 = sshll.u32 %s0, 4
      %s19 = int_to_ptr.hbm [resolvable:$true] %s18
      %s20 = sshll.u32 [#allocation3], 4
      %s21 = int_to_ptr.vmem [resolvable:$true] %s20
      %26 = dma.hbm_to_vmem [thread:$0]  %s19, 256, %s21, [#allocation4], 128, 128, 8
    $region5: #{sublayer_connection_in_fused.1} parent=1 // pred_fallthru
      _
    // Predicated region
    $region6: #{sublayer_connection_in_fused.1} parent=1 // pred_check
      _
    $region7: #{sublayer_connection_in_fused.1} parent=1 // pred_check_branch
      %28 = sbr.rel (0) target = $region9
    $region8: #{sublayer_connection_in_fused.1} parent=1 // pred_region
      %30 = vsyncadd [#allocation7], 0
      %s31 = sshll.u32 %s1, 4
      %s32 = int_to_ptr.hbm [resolvable:$true] %s31
      %s33 = sshll.u32 [#allocation6], 4
      %s34 = int_to_ptr.vmem [resolvable:$true] %s33
      %39 = dma.hbm_to_vmem [thread:$0]  %s32, 2048, %s34, [#allocation7], 128, 128, 8
    $region9: #{sublayer_connection_in_fused.1} parent=1 // pred_fallthru
      _
    // Predicated region
    $region10: #{sublayer_connection_in_fused.1} parent=1 // pred_check
      _
    $region11: #{sublayer_connection_in_fused.1} parent=1 // pred_check_branch
      %41 = sbr.rel (0) target = $region13
    $region12: #{sublayer_connection_in_fused.1} parent=1 // pred_region
      %43 = vsyncadd [#allocation7], 0
      %s44 = sshll.u32 %s2, 4
      %s45 = int_to_ptr.hbm [resolvable:$true] %s44
      %s46 = sshll.u32 [#allocation8], 4
      %s47 = int_to_ptr.vmem [resolvable:$true] %s46
      %52 = dma.hbm_to_vmem [thread:$0]  %s45, 256, %s47, [#allocation7], 128, 128, 8
    $region13: #{sublayer_connection_in_fused.1} parent=1 // pred_fallthru
      _
    // Predicated region
    $region14: #{sublayer_connection_in_fused.1} parent=1 // pred_check
      _
    $region15: #{sublayer_connection_in_fused.1} parent=1 // pred_check_branch
      %54 = sbr.rel (0) target = $region17
    $region16: #{sublayer_connection_in_fused.1} parent=1 // pred_region
      _
    $region17: #{sublayer_connection_in_fused.1} parent=1 // pred_fallthru
      _
    // Predicated region
    $region18: #{sublayer_connection_in_fused.1} parent=1 // pred_check
      _
    $region19: #{sublayer_connection_in_fused.1} parent=1 // pred_check_branch
      %56 = sbr.rel (0) target = $region21
    $region20: #{sublayer_connection_in_fused.1} parent=1 // pred_region
      _
    $region21: #{sublayer_connection_in_fused.1} parent=1 // pred_fallthru
      _
    // Predicated region
    $region22: #{sublayer_connection_in_fused.1} parent=1 // pred_check
      _
    $region23: #{sublayer_connection_in_fused.1} parent=1 // pred_check_branch
      %58 = sbr.rel (0) target = $region25
    $region24: #{sublayer_connection_in_fused.1} parent=1 // pred_region
      _
    $region25: #{sublayer_connection_in_fused.1} parent=1 // pred_fallthru
      _
    // Predicated region
    $region26: #{sublayer_connection_in_fused.1} parent=1 // pred_check
      _
    $region27: #{sublayer_connection_in_fused.1} parent=1 // pred_check_branch
      %60 = sbr.rel (0) target = $region29
    $region28: #{sublayer_connection_in_fused.1} parent=1 // pred_region
      %62 = dma.done [#allocation4], 256
    $region29: #{sublayer_connection_in_fused.1} parent=1 // pred_fallthru
      _
    // Predicated region
    $region30: #{sublayer_connection_in_fused.1} parent=1 // pred_check
      _
    $region31: #{sublayer_connection_in_fused.1} parent=1 // pred_check_branch
      %64 = sbr.rel (0) target = $region33
    $region32: #{sublayer_connection_in_fused.1} parent=1 // pred_region
      %66 = dma.done [#allocation7], 2048
    $region33: #{sublayer_connection_in_fused.1} parent=1 // pred_fallthru
      _
    // Predicated region
    $region34: #{sublayer_connection_in_fused.1} parent=1 // pred_check
      _
    $region35: #{sublayer_connection_in_fused.1} parent=1 // pred_check_branch
      %68 = sbr.rel (0) target = $region37
    $region36: #{sublayer_connection_in_fused.1} parent=1 // pred_region
      %70 = dma.done [#allocation7], 256
    $region37: #{sublayer_connection_in_fused.1} parent=1 // pred_fallthru
      _
    %p71 = scmp.eq.s32.totalorder 0, 0
    // Predicated region
    $region38: #{sublayer_connection_in_fused.1} parent=1 // pred_check
      %p72 = pneg %p71
    $region39: #{sublayer_connection_in_fused.1} parent=1 // pred_check_branch
      %74 = sbr.rel (%p72) target = $region41
    $region40: #{sublayer_connection_in_fused.1} parent=1 // pred_region
      %75 = vst [vmem:[#allocation2] sm:$0xff] 0.0
      %76 = vst [vmem:[#allocation2 + $0x8] sm:$0xff] 0.0
    $region41: #{sublayer_connection_in_fused.1} parent=1 // pred_fallthru
      _
    %v77 = vld [vmem:[#allocation2] sm:$0xff]
    %v78 = vld [vmem:[#allocation2 + $0x8] sm:$0xff]
    %v79 = vld [vmem:[#allocation3] sm:$0xff]
    %v80 = vld [vmem:[#allocation3 + $0x8] sm:$0xff]
    %v81 = vld [vmem:[#allocation6] sm:$0xff]
    %v82 = vld [vmem:[#allocation6 + $0x8] sm:$0xff]
    %v83 = vld [vmem:[#allocation6 + $0x10] sm:$0xff]
    %v84 = vld [vmem:[#allocation6 + $0x18] sm:$0xff]
    %v85 = vld [vmem:[#allocation6 + $0x20] sm:$0xff]
    %v86 = vld [vmem:[#allocation6 + $0x28] sm:$0xff]
    %v87 = vld [vmem:[#allocation6 + $0x30] sm:$0xff]
    %v88 = vld [vmem:[#allocation6 + $0x38] sm:$0xff]
    %v89 = vld [vmem:[#allocation6 + $0x40] sm:$0xff]
    %v90 = vld [vmem:[#allocation6 + $0x48] sm:$0xff]
    %v91 = vld [vmem:[#allocation6 + $0x50] sm:$0xff]
    %v92 = vld [vmem:[#allocation6 + $0x58] sm:$0xff]
    %v93 = vld [vmem:[#allocation6 + $0x60] sm:$0xff]
    %v94 = vld [vmem:[#allocation6 + $0x68] sm:$0xff]
    %v95 = vld [vmem:[#allocation6 + $0x70] sm:$0xff]
    %v96 = vld [vmem:[#allocation6 + $0x78] sm:$0xff]
    %97 = vmatpush.msra.mxu0 %v96
    %98 = vmatpush.msra.mxu0 %v95
    %99 = vmatpush.msra.mxu0 %v94
    %100 = vmatpush.msra.mxu0 %v93
    %101 = vmatpush.msra.mxu0 %v92
    %102 = vmatpush.msra.mxu0 %v91
    %103 = vmatpush.msra.mxu0 %v90
    %104 = vmatpush.msra.mxu0 %v89
    %105 = vmatpush.msra.mxu0 %v88
    %106 = vmatpush.msra.mxu0 %v87
    %107 = vmatpush.msra.mxu0 %v86
    %108 = vmatpush.msra.mxu0 %v85
    %109 = vmatpush.msra.mxu0 %v84
    %110 = vmatpush.msra.mxu0 %v83
    %111 = vmatpush.msra.mxu0 %v82
    %112 = vmatpush.msra.mxu0 %v81
    %113 = vmatmul.f32.gmra.mxu0 %v79
    %v114 = vpop.f32.mrf.mxu0
    %v115 = vadd.f32 0.0, %v114
    %116 = vmatmul.f32.gmra.mxu0 %v80
    %v117 = vpop.f32.mrf.mxu0
    %v118 = vadd.f32 0.0, %v117
    %119 = vdwg.mxu0
    %v120 = vadd.f32 %v77, %v115
    %v121 = vadd.f32 %v78, %v118
    %122 = vst [vmem:[#allocation2] sm:$0xff] %v120
    %123 = vst [vmem:[#allocation2 + $0x8] sm:$0xff] %v121
    // Predicated region
    $region42: #{sublayer_connection_in_fused.1} parent=1 // pred_check
      %p124 = pneg %p71
    $region43: #{sublayer_connection_in_fused.1} parent=1 // pred_check_branch
      %126 = sbr.rel (%p124) target = $region45
    $region44: #{sublayer_connection_in_fused.1} parent=1 // pred_region
      %v127 = vld [vmem:[#allocation2] sm:$0xff]
      %v128 = vld [vmem:[#allocation2 + $0x8] sm:$0xff]
      %v129 = vld [vmem:[#allocation8] sm:$0xff]
      %v130 = vld [vmem:[#allocation8 + $0x8] sm:$0xff]
      %v131 = vadd.f32 %v127, %v129
      %v132 = vadd.f32 %v128, %v130
      %v133 = vld [vmem:[%s3] sm:$0x1]
      %v135 = vperm.slane %v133, 0
      %v137 = vadd.f32 %v131, %v135
      %v138 = vadd.f32 %v132, %v135
      %v139 = vld [vmem:[%s4] sm:$0x1]
      %v140 = vld [vmem:[%s5] sm:$0x1]
      %141 = vadd.xlane.f32.xlu0 %v137
      %v142 = vpop.xlane.xlu0 %141
      %143 = vadd.xlane.f32.xlu0 %v138
      %v144 = vpop.xlane.xlu0 %143
      %v145 = vrcp.pop 128.0
      %v146 = vmul.f32 128.0, %v145
      %v147 = vsub.f32 1.0, %v146
      %v148 = vmul.f32 %v145, %v147
      %v149 = vadd.f32 %v145, %v148
      %vm150 = vweird.f32 %v145
      %v151 = vsel %vm150, %v145, %v149
      %v152 = vmul.f32 %v142, %v151
      %v153 = vmul.f32 %v144, %v151
      %v154 = vsub.f32 %v137, %v152
      %v155 = vsub.f32 %v138, %v153
      %v156 = vmul.f32 %v154, %v154
      %v157 = vmul.f32 %v155, %v155
      %158 = vadd.xlane.f32.xlu0 %v156
      %v159 = vpop.xlane.xlu0 %158
      %160 = vadd.xlane.f32.xlu0 %v157
      %v161 = vpop.xlane.xlu0 %160
      %v162 = vmul.f32 %v159, %v151
      %v163 = vmul.f32 %v161, %v151
      %v164 = vadd.f32 %v162, 1e-12
      %v165 = vadd.f32 %v163, 1e-12
      %v166 = vrsqrt.pop %v164
      %v167 = vmul.f32 %v166, %v164
      %v168 = vmul.f32 %v167, %v166
      %v169 = vmul.f32 0.5, %v168
      %v170 = vsub.f32 1.5, %v169
      %v171 = vmul.f32 %v166, %v170
      %vm172 = vweird.f32 %v164
      %vm173 = vweird.f32 %v166
      %vm174 = vmor %vm172, %vm173
      %v175 = vsel %vm174, %v166, %v171
      %v176 = vrsqrt.pop %v165
      %v177 = vmul.f32 %v176, %v165
      %v178 = vmul.f32 %v177, %v176
      %v179 = vmul.f32 0.5, %v178
      %v180 = vsub.f32 1.5, %v179
      %v181 = vmul.f32 %v176, %v180
      %vm182 = vweird.f32 %v165
      %vm183 = vweird.f32 %v176
      %vm184 = vmor %vm182, %vm183
      %v185 = vsel %vm184, %v176, %v181
      %v186 = vmul.f32 %v154, %v175
      %v187 = vmul.f32 %v155, %v185
      %v189 = vperm.slane %v139, 0
      %v191 = vmul.f32 %v189, %v186
      %v192 = vmul.f32 %v189, %v187
      %v194 = vperm.slane %v140, 0
      %v196 = vadd.f32 %v191, %v194
      %v197 = vadd.f32 %v192, %v194
      %198 = vst [vmem:[#allocation9] sm:$0xff] %v196
      %199 = vst [vmem:[#allocation9 + $0x8] sm:$0xff] %v197
    $region45: #{sublayer_connection_in_fused.1} parent=1 // pred_fallthru
      _
    // Predicated region
    $region46: #{sublayer_connection_in_fused.1} parent=1 // pred_check
      _
    $region47: #{sublayer_connection_in_fused.1} parent=1 // pred_check_branch
      %201 = sbr.rel (0) target = $region49
    $region48: #{sublayer_connection_in_fused.1} parent=1 // pred_region
      %203 = vsyncadd [#allocation5], 0
      %s204 = sshll.u32 [#allocation9], 4
      %s205 = int_to_ptr.vmem [resolvable:$true] %s204
      %s206 = sshll.u32 %s6, 4
      %s207 = int_to_ptr.hbm [resolvable:$true] %s206
      %212 = dma.vmem_to_hbm [thread:$0]  %s205, 256, %s207, [#allocation5], 128, 128, 8
    $region49: #{sublayer_connection_in_fused.1} parent=1 // pred_fallthru
      _
    // Predicated region
    $region50: #{sublayer_connection_in_fused.1} parent=1 // pred_check
      _
    $region51: #{sublayer_connection_in_fused.1} parent=1 // pred_check_branch
      %214 = sbr.rel (0) target = $region53
    $region52: #{sublayer_connection_in_fused.1} parent=1 // pred_region
      %216 = dma.done [#allocation5], 256
    $region53: #{sublayer_connection_in_fused.1} parent=1 // pred_fallthru
      _
    %217 = vsyncpa [#allocation4], 1
    %218 = vsyncpa [#allocation7], 1
    %219 = vsyncpa [#allocation5], 1

</llo_original>
